<compile_context>
chip_gen: v5e
topology: v5e:2x2
jax: 0.10.0
libtpu: 0.0.40
codegen_flags: <defaults>
</compile_context>

<pallas_src>
import functools

import jax
import jax.numpy as jnp
from jax.experimental import pallas as pl
from jax.experimental.pallas import tpu as pltpu


def _round_up(v, m):
    return (v + m - 1) // m * m


def _pick_h_tile(h, target, unit=128):
    """Largest multiple of `unit` that divides h and is <= max(target, unit)."""
    if h % unit != 0:
        return h  # fall back to a single tile (still correct, just unaligned)
    t = min(_round_up(target, unit), h)
    t = (t // unit) * unit
    while t >= unit:
        if h % t == 0:
            return t
        t -= unit
    return h


def _gated_mlp_kernel(x_ref, w1_ref, w2_ref, o_ref, acc_ref, *, th):
    """One (row-tile, H-tile) step of the fused GatedMLP.

    x_ref:   (tm, Din)      bf16 token tile (constant across the H axis)
    w1_ref:  (Din, 2*th)    fc1 tile, columns = [value_tile | gate_tile]
    w2_ref:  (th, Dout)     fc2 tile
    o_ref:   (tm, Dout)     output tile (written on last H step)
    acc_ref: (tm, Dout) f32 accumulator scratch
    """
    j = pl.program_id(1)

    @pl.when(j == 0)
    def _init():
        acc_ref[...] = jnp.zeros_like(acc_ref)

    # Single fused fc1 matmul for this H-tile (bf16 operands, f32 accumulate).
    yg = jnp.dot(x_ref[...], w1_ref[...], preferred_element_type=jnp.float32)
    y = yg[:, :th]          # value half   (th % 128 == 0 -> lane-aligned slice)
    g = yg[:, th:]          # gate half
    # SiLU(gate) * value in f32: sigmoid -> EUP slot, mul -> VPU.
    gated = y * (g * jax.nn.sigmoid(g))
    # Partial fc2 projection for this H-tile, accumulated in f32.
    acc_ref[...] += jnp.dot(gated.astype(w2_ref.dtype), w2_ref[...],
                            preferred_element_type=jnp.float32)

    @pl.when(j == pl.num_programs(1) - 1)
    def _finalize():
        o_ref[...] = acc_ref[...].astype(o_ref.dtype)


def prepack_gated_mlp_weights(w1, w2, *, block_h=1024,
                              compute_dtype=jnp.bfloat16):
    """One-time weight packing (call at init time, NOT per forward).

    w1: (2H, Din)  torch fc1.weight
    w2: (Dout, H)  torch fc2.weight
    Returns (w1_packed, w2_packed, th):
      w1_packed: (Din, 2H) with per-H-tile [value_tile | gate_tile] layout
      w2_packed: (H, Dout)
      th:        H tile size used for packing (multiple of 128 when possible)
    """
    two_h, din = w1.shape
    h = two_h // 2
    th = _pick_h_tile(h, block_h)
    nh = h // th
    w_v = jnp.transpose(w1[:h, :]).reshape(din, nh, 1, th)   # value half
    w_g = jnp.transpose(w1[h:, :]).reshape(din, nh, 1, th)   # gate half
    w1_packed = jnp.concatenate([w_v, w_g], axis=2).reshape(din, 2 * h)
    w2_packed = jnp.transpose(w2)
    return (w1_packed.astype(compute_dtype),
            w2_packed.astype(compute_dtype),
            th)


def gated_mlp_forward(x, w1_packed, w2_packed, th, *, block_m=256,
                      out_dtype=None):
    """Fused GatedMLP forward on pre-packed weights.

    x:         (..., Din)
    w1_packed: (Din, 2H)   from prepack_gated_mlp_weights
    w2_packed: (H, Dout)   from prepack_gated_mlp_weights
    Returns (..., Dout).
    """
    orig_shape = x.shape
    din = orig_shape[-1]
    x2 = x.reshape(-1, din)
    m = x2.shape[0]

    din_w, two_h = w1_packed.shape
    assert din_w == din
    h = two_h // 2
    h_w, dout = w2_packed.shape
    assert h_w == h and h % th == 0
    nh = h // th

    compute_dtype = w1_packed.dtype
    out_dtype = out_dtype or x.dtype

    # bf16 rows pack 2-per-sublane -> pad row count to a multiple of 16.
    row_unit = 16 if compute_dtype == jnp.bfloat16 else 8
    tm = min(block_m, _round_up(m, row_unit))
    # Give megacore (v7x) at least two parallel row tiles when feasible.
    if _round_up(m, row_unit) // tm < 2 and tm >= 2 * row_unit:
        tm = _round_up(tm // 2, row_unit)
    m_pad = _round_up(m, tm)

    xc = x2.astype(compute_dtype)
    if m_pad != m:
        xc = jnp.pad(xc, ((0, m_pad - m), (0, 0)))
    n_m = m_pad // tm

    # Explicit VMEM budget: double-buffered in/out blocks + f32 accumulator,
    # with ~30% headroom (+ slack for compiler scratch), capped at v7x's 64 MiB.
    isz = jnp.dtype(compute_dtype).itemsize
    osz = jnp.dtype(out_dtype).itemsize
    vmem_bytes = (2 * tm * din * isz            # x tile
                  + 2 * din * 2 * th * isz      # fc1 tile (value|gate)
                  + 2 * th * dout * isz         # fc2 tile
                  + 2 * tm * dout * osz         # output tile
                  + tm * dout * 4)              # f32 accumulator
    vmem_limit = min(int(vmem_bytes * 1.3) + (4 << 20), 64 << 20)

    kernel = functools.partial(_gated_mlp_kernel, th=th)
    out = pl.pallas_call(
        kernel,
        out_shape=jax.ShapeDtypeStruct((m_pad, dout), out_dtype),
        grid_spec=pltpu.PrefetchScalarGridSpec(
            num_scalar_prefetch=0,
            grid=(n_m, nh),                                   # rows, then H
            in_specs=[
                pl.BlockSpec((tm, din), lambda i, j: (i, 0)),      # x tile
                pl.BlockSpec((din, 2 * th), lambda i, j: (0, j)),  # fc1 tile
                pl.BlockSpec((th, dout), lambda i, j: (j, 0)),     # fc2 tile
            ],
            out_specs=pl.BlockSpec((tm, dout), lambda i, j: (i, 0)),
            scratch_shapes=[pltpu.VMEM((tm, dout), jnp.float32)],
        ),
        compiler_params=pltpu.CompilerParams(
            dimension_semantics=("parallel", "arbitrary"),
            vmem_limit_bytes=vmem_limit,
        ),
    )(xc, w1_packed, w2_packed)

    out = out[:m]
    return out.reshape(*orig_shape[:-1], dout)


def _reference_forward(x, w1, w2):
    """Pure-JAX reference mirroring the PyTorch forward (ground truth)."""
    h = w1.shape[0] // 2
    y = jnp.einsum("...d,kd->...k", x, w1, precision=jax.lax.Precision.HIGHEST)
    val, gate = y[..., :h], y[..., h:]
    gated = val * (gate * jax.nn.sigmoid(gate))
    return jnp.einsum("...h,oh->...o", gated, w2,
                      precision=jax.lax.Precision.HIGHEST)


if __name__ == "__main__":
    # Small shapes consistent with the module: batch=2, seq=8, in_features=128.
    # Module's own rule: hidden = round_up(int(8*128/3), 128) = 384, out = 128.
    B, S, DIN = 2, 8, 128
    H = ((int(8 * DIN / 3) + 127) // 128) * 128   # 384
    DOUT = DIN

    key = jax.random.PRNGKey(0)
    kx, k1, k2 = jax.random.split(key, 3)
    x = jax.random.normal(kx, (B, S, DIN), dtype=jnp.float32)
    # nn.Linear-style uniform init (deterministic).
    b1 = 1.0 / (DIN ** 0.5)
    w1 = jax.random.uniform(k1, (2 * H, DIN), minval=-b1, maxval=b1,
                            dtype=jnp.float32)
    b2 = 1.0 / (H ** 0.5)
    w2 = jax.random.uniform(k2, (DOUT, H), minval=-b2, maxval=b2,
                            dtype=jnp.float32)

    # One-time weight pre-packing (layout + bf16 cast hoisted out of forward).
    w1p, w2p, th = prepack_gated_mlp_weights(w1, w2)

    out = gated_mlp_forward(x, w1p, w2p, th)
    out = jax.block_until_ready(out)

    ref = _reference_forward(x, w1, w2)
    assert out.shape == (B, S, DOUT), out.shape
    # bf16 MXU operands (f32 accumulation) vs an f32 HIGHEST-precision ref.
    assert jnp.allclose(out, ref, atol=2e-2, rtol=2e-2), (
        "mismatch vs reference: max abs err = "
        f"{float(jnp.max(jnp.abs(out - ref)))}")

    print("KERNEL_OK")
</pallas_src>

<mosaic_0001>
module attributes {stable_mosaic.version = 11 : i64} {
  func.func @_gated_mlp_kernel(%arg0: i32, %arg1: i32, %arg2: memref<16x128xbf16, #tpu.memory_space<vmem>>, %arg3: memref<128x768xbf16, #tpu.memory_space<vmem>>, %arg4: memref<384x128xbf16, #tpu.memory_space<vmem>>, %arg5: memref<16x128xf32, #tpu.memory_space<vmem>>, %arg6: memref<16x128xf32, #tpu.memory_space<vmem>>) attributes {dimension_semantics = [#tpu.dimension_semantics<parallel>, #tpu.dimension_semantics<arbitrary>], iteration_bounds = array<i64: 1, 1>, scalar_prefetch = 0 : i64, scratch_operands = 1 : i64, tpu.core_type = #tpu.core_type<tc>, window_params = [{transform_indices = @transform_0, window_bounds = array<i64: 16, 128>}, {transform_indices = @transform_1, window_bounds = array<i64: 128, 768>}, {transform_indices = @transform_2, window_bounds = array<i64: 384, 128>}, {transform_indices = @transform_3, window_bounds = array<i64: 16, 128>}]} {
    %c0_i32 = arith.constant 0 : i32
    %0 = arith.cmpi eq, %arg1, %c0_i32 : i32
    %1 = arith.extui %0 : i1 to i32
    %c0_i32_0 = arith.constant 0 : i32
    %2 = arith.cmpi ne, %1, %c0_i32_0 : i32
    scf.if %2 {
      %cst_14 = arith.constant 0.000000e+00 : f32
      %24 = vector.broadcast %cst_14 : f32 to vector<16x128xf32>
      %c0_15 = arith.constant 0 : index
      %c0_16 = arith.constant 0 : index
      %25 = vector.load %arg6[%c0_15, %c0_16] : memref<16x128xf32, #tpu.memory_space<vmem>>, vector<16x128xf32>
      tpu.vector_store %arg6[%c0_15, %c0_16], %24 {strides = array<i32>} : memref<16x128xf32, #tpu.memory_space<vmem>>, vector<16x128xf32>,
    } else {
    }
    %c0 = arith.constant 0 : index
    %c0_1 = arith.constant 0 : index
    %3 = vector.load %arg2[%c0, %c0_1] : memref<16x128xbf16, #tpu.memory_space<vmem>>, vector<16x128xbf16>
    %c0_2 = arith.constant 0 : index
    %c0_3 = arith.constant 0 : index
    %4 = vector.load %arg3[%c0_2, %c0_3] : memref<128x768xbf16, #tpu.memory_space<vmem>>, vector<128x768xbf16>
    %cst = arith.constant dense<0.000000e+00> : vector<16x768xf32>
    %5 = tpu.matmul %3, %4, %cst {dimension_numbers = #tpu.dot_dimension_numbers<[1], [0], [0], [1], [0, 0, 1, 1], [], []>} : vector<16x128xbf16>, vector<128x768xbf16>, vector<16x768xf32> -> vector<16x768xf32>
    %6 = vector.extract_strided_slice %5 {offsets = [0, 0], sizes = [16, 384], strides = [1, 1]} : vector<16x768xf32> to vector<16x384xf32>
    %7 = vector.extract_strided_slice %5 {offsets = [0, 384], sizes = [16, 384], strides = [1, 1]} : vector<16x768xf32> to vector<16x384xf32>
    %8 = arith.negf %7 : vector<16x384xf32>
    %9 = math.exp %8 : vector<16x384xf32>
    %cst_4 = arith.constant 1.000000e+00 : f32
    %10 = vector.broadcast %cst_4 : f32 to vector<16x384xf32>
    %11 = arith.addf %10, %9 : vector<16x384xf32>
    %12 = arith.divf %10, %11 : vector<16x384xf32>
    %13 = arith.mulf %7, %12 : vector<16x384xf32>
    %14 = arith.mulf %6, %13 : vector<16x384xf32>
    %c0_5 = arith.constant 0 : index
    %c0_6 = arith.constant 0 : index
    %15 = vector.load %arg6[%c0_5, %c0_6] : memref<16x128xf32, #tpu.memory_space<vmem>>, vector<16x128xf32>
    %16 = arith.truncf %14 : vector<16x384xf32> to vector<16x384xbf16>
    %c0_7 = arith.constant 0 : index
    %c0_8 = arith.constant 0 : index
    %17 = vector.load %arg4[%c0_7, %c0_8] : memref<384x128xbf16, #tpu.memory_space<vmem>>, vector<384x128xbf16>
    %cst_9 = arith.constant dense<0.000000e+00> : vector<16x128xf32>
    %18 = tpu.matmul %16, %17, %cst_9 {dimension_numbers = #tpu.dot_dimension_numbers<[1], [0], [0], [1], [0, 0, 1, 1], [], []>} : vector<16x384xbf16>, vector<384x128xbf16>, vector<16x128xf32> -> vector<16x128xf32>
    %19 = arith.addf %15, %18 : vector<16x128xf32>
    %c0_10 = arith.constant 0 : index
    %c0_11 = arith.constant 0 : index
    %20 = vector.load %arg6[%c0_10, %c0_11] : memref<16x128xf32, #tpu.memory_space<vmem>>, vector<16x128xf32>
    tpu.vector_store %arg6[%c0_10, %c0_11], %19 {strides = array<i32>} : memref<16x128xf32, #tpu.memory_space<vmem>>, vector<16x128xf32>,
    %c0_i32_12 = arith.constant 0 : i32
    %21 = arith.cmpi eq, %arg1, %c0_i32_12 : i32
    %22 = arith.extui %21 : i1 to i32
    %c0_i32_13 = arith.constant 0 : i32
    %23 = arith.cmpi ne, %22, %c0_i32_13 : i32
    scf.if %23 {
      %c0_14 = arith.constant 0 : index
      %c0_15 = arith.constant 0 : index
      %24 = vector.load %arg6[%c0_14, %c0_15] : memref<16x128xf32, #tpu.memory_space<vmem>>, vector<16x128xf32>
      %c0_16 = arith.constant 0 : index
      %c0_17 = arith.constant 0 : index
      %25 = vector.load %arg5[%c0_16, %c0_17] : memref<16x128xf32, #tpu.memory_space<vmem>>, vector<16x128xf32>
      tpu.vector_store %arg5[%c0_16, %c0_17], %24 {strides = array<i32>} : memref<16x128xf32, #tpu.memory_space<vmem>>, vector<16x128xf32>,
    } else {
    }
    return
  }
  func.func @transform_0(%arg0: i32, %arg1: i32) -> (i32, i32) {
    %c0_i32 = arith.constant 0 : i32
    %c0_i32_0 = arith.constant 0 : i32
    return %arg0, %c0_i32 : i32, i32
  }
  func.func @transform_1(%arg0: i32, %arg1: i32) -> (i32, i32) {
    %c0_i32 = arith.constant 0 : i32
    %c0_i32_0 = arith.constant 0 : i32
    return %c0_i32, %arg1 : i32, i32
  }
  func.func @transform_2(%arg0: i32, %arg1: i32) -> (i32, i32) {
    %c0_i32 = arith.constant 0 : i32
    %c0_i32_0 = arith.constant 0 : i32
    return %arg1, %c0_i32 : i32, i32
  }
  func.func @transform_3(%arg0: i32, %arg1: i32) -> (i32, i32) {
    %c0_i32 = arith.constant 0 : i32
    %c0_i32_0 = arith.constant 0 : i32
    return %arg0, %c0_i32 : i32, i32
  }
}

</mosaic_0001>

<llo_original>
// kernel: tpu_custom_call.1
$region0: #{tpu_custom_call.1}
  #allocation0 [shape = 'u32[]', space=smem, size = 0x4, offset = 0x4, fixed_abs, tag = 'smem constant byte address 0x4 - core index']
  #allocation1 [shape = 'u32[72,128]{1,0:T(1,128)}', space=vmem, size = 0x9000, scoped, tag = 'internal scratch']
  #allocation2 [shape = 'f32[16,128]{1,0:T(8,128)}', space=vmem, size = 0x2000, scoped, tag = 'scratch operand']
  %s0 = inlined_call_operand.hbm [shape: bf16[16,128], index: 0, kind: input, shape index: {}]
  %s1 = inlined_call_operand.hbm [shape: bf16[128,768], index: 1, kind: input, shape index: {}]
  %s2 = inlined_call_operand.hbm [shape: bf16[384,128], index: 2, kind: input, shape index: {}]
  %s3 = inlined_call_operand.hbm [shape: f32[16,128], index: 3, kind: output, shape index: {}]
  %s4 = sld [smem:[#allocation0]]
  $region42: #{tpu_custom_call.1} parent=0
    _
  %s6 = ssub.s32 1, %s4
  %s7 = scalar_select 0, %s6, %s4
  $region1: #{tpu_custom_call.1} parent=0
    #allocation3 [shape = 'u8[4096]{0}', space=vmem, size = 0x1000, scoped, tag = 'input window, operand 0, single buffered']
    #allocation4 [shape = 's32[1]{0}', space=sflag, size = 0x4, scoped, tag = 'scoped memory for tpu_custom_call.1']
    #allocation5 [shape = 's32[1]{0}', space=sflag, size = 0x4, scoped, tag = 'scoped memory for tpu_custom_call.1']
    #allocation6 [shape = 'u8[196608]{0}', space=vmem, size = 0x30000, scoped, tag = 'input window, operand 1, single buffered']
    #allocation7 [shape = 's32[1]{0}', space=sflag, size = 0x4, scoped, tag = 'scoped memory for tpu_custom_call.1']
    #allocation8 [shape = 'u8[98304]{0}', space=vmem, size = 0x18000, scoped, tag = 'input window, operand 2, single buffered']
    #allocation9 [shape = 'u8[8192]{0}', space=vmem, size = 0x2000, scoped, tag = 'output window, operand 0, single buffered']
    %8 = vsyncpa [#allocation4], 0
    %9 = vsyncpa [#allocation7], 0
    %10 = vsyncpa [#allocation5], 0
    // Predicated region
    $region2: #{tpu_custom_call.1} parent=1 // pred_check
      _
    $region3: #{tpu_custom_call.1} parent=1 // pred_check_branch
      %12 = sbr.rel (0) target = $region5
    $region4: #{tpu_custom_call.1} parent=1 // pred_region
      %14 = vsyncadd [#allocation4], 0
      %s15 = sshll.u32 %s0, 4
      %s16 = int_to_ptr.hbm [resolvable:$true] %s15
      %s17 = sshll.u32 [#allocation3], 4
      %s18 = int_to_ptr.vmem [resolvable:$true] %s17
      %23 = dma.hbm_to_vmem [thread:$0]  %s16, 128, %s18, [#allocation4], 64, 64, 4
    $region5: #{tpu_custom_call.1} parent=1 // pred_fallthru
      _
    // Predicated region
    $region6: #{tpu_custom_call.1} parent=1 // pred_check
      _
    $region7: #{tpu_custom_call.1} parent=1 // pred_check_branch
      %25 = sbr.rel (0) target = $region9
    $region8: #{tpu_custom_call.1} parent=1 // pred_region
      %27 = vsyncadd [#allocation7], 0
      %s28 = sshll.u32 %s1, 4
      %s29 = int_to_ptr.hbm [resolvable:$true] %s28
      %s30 = sshll.u32 [#allocation6], 4
      %s31 = int_to_ptr.vmem [resolvable:$true] %s30
      %36 = dma.hbm_to_vmem [thread:$0]  %s29, 6144, %s31, [#allocation7], 384, 384, 24
    $region9: #{tpu_custom_call.1} parent=1 // pred_fallthru
      _
    // Predicated region
    $region10: #{tpu_custom_call.1} parent=1 // pred_check
      _
    $region11: #{tpu_custom_call.1} parent=1 // pred_check_branch
      %38 = sbr.rel (0) target = $region13
    $region12: #{tpu_custom_call.1} parent=1 // pred_region
      %40 = vsyncadd [#allocation7], 0
      %s41 = sshll.u32 %s2, 4
      %s42 = int_to_ptr.hbm [resolvable:$true] %s41
      %s43 = sshll.u32 [#allocation8], 4
      %s44 = int_to_ptr.vmem [resolvable:$true] %s43
      %49 = dma.hbm_to_vmem [thread:$0]  %s42, 3072, %s44, [#allocation7], 64, 64, 4
    $region13: #{tpu_custom_call.1} parent=1 // pred_fallthru
      _
    // Predicated region
    $region14: #{tpu_custom_call.1} parent=1 // pred_check
      _
    $region15: #{tpu_custom_call.1} parent=1 // pred_check_branch
      %51 = sbr.rel (0) target = $region17
    $region16: #{tpu_custom_call.1} parent=1 // pred_region
      %53 = dma.done [#allocation4], 128
    $region17: #{tpu_custom_call.1} parent=1 // pred_fallthru
      _
    // Predicated region
    $region18: #{tpu_custom_call.1} parent=1 // pred_check
      _
    $region19: #{tpu_custom_call.1} parent=1 // pred_check_branch
      %55 = sbr.rel (0) target = $region21
    $region20: #{tpu_custom_call.1} parent=1 // pred_region
      %57 = dma.done [#allocation7], 6144
    $region21: #{tpu_custom_call.1} parent=1 // pred_fallthru
      _
    // Predicated region
    $region22: #{tpu_custom_call.1} parent=1 // pred_check
      _
    $region23: #{tpu_custom_call.1} parent=1 // pred_check_branch
      %59 = sbr.rel (0) target = $region25
    $region24: #{tpu_custom_call.1} parent=1 // pred_region
      %61 = dma.done [#allocation7], 3072
    $region25: #{tpu_custom_call.1} parent=1 // pred_fallthru
      _
    %p62 = scmp.eq.s32.totalorder 0, 0
    // Predicated region
    $region26: #{tpu_custom_call.1} parent=1 // pred_check
      %p63 = pneg %p62
    $region27: #{tpu_custom_call.1} parent=1 // pred_check_branch
      %65 = sbr.rel (%p63) target = $region29
    $region28: #{tpu_custom_call.1} parent=1 // pred_region
      %66 = vst [vmem:[#allocation2] sm:$0xff] 0.0
      %67 = vst [vmem:[#allocation2 + $0x8] sm:$0xff] 0.0
    $region29: #{tpu_custom_call.1} parent=1 // pred_fallthru
      _
    %v68 = vld [vmem:[#allocation3] sm:$0xf]
    %v69 = vld [vmem:[#allocation3 + $0x4] sm:$0xf]
    %v70 = vld [vmem:[#allocation6] sm:$0xff]
    %v71 = vld [vmem:[#allocation6 + $0x8] sm:$0xff]
    %v72 = vld [vmem:[#allocation6 + $0x10] sm:$0xff]
    %v73 = vld [vmem:[#allocation6 + $0x18] sm:$0xff]
    %v74 = vld [vmem:[#allocation6 + $0x20] sm:$0xff]
    %v75 = vld [vmem:[#allocation6 + $0x28] sm:$0xff]
    %v76 = vld [vmem:[#allocation6 + $0x30] sm:$0xff]
    %v77 = vld [vmem:[#allocation6 + $0x38] sm:$0xff]
    %v78 = vld [vmem:[#allocation6 + $0x40] sm:$0xff]
    %v79 = vld [vmem:[#allocation6 + $0x48] sm:$0xff]
    %v80 = vld [vmem:[#allocation6 + $0x50] sm:$0xff]
    %v81 = vld [vmem:[#allocation6 + $0x58] sm:$0xff]
    %v82 = vld [vmem:[#allocation6 + $0x60] sm:$0xff]
    %v83 = vld [vmem:[#allocation6 + $0x68] sm:$0xff]
    %v84 = vld [vmem:[#allocation6 + $0x70] sm:$0xff]
    %v85 = vld [vmem:[#allocation6 + $0x78] sm:$0xff]
    %v86 = vld [vmem:[#allocation6 + $0x80] sm:$0xff]
    %v87 = vld [vmem:[#allocation6 + $0x88] sm:$0xff]
    %v88 = vld [vmem:[#allocation6 + $0x90] sm:$0xff]
    %v89 = vld [vmem:[#allocation6 + $0x98] sm:$0xff]
    %v90 = vld [vmem:[#allocation6 + $0xa0] sm:$0xff]
    %v91 = vld [vmem:[#allocation6 + $0xa8] sm:$0xff]
    %v92 = vld [vmem:[#allocation6 + $0xb0] sm:$0xff]
    %v93 = vld [vmem:[#allocation6 + $0xb8] sm:$0xff]
    %v94 = vld [vmem:[#allocation6 + $0xc0] sm:$0xff]
    %v95 = vld [vmem:[#allocation6 + $0xc8] sm:$0xff]
    %v96 = vld [vmem:[#allocation6 + $0xd0] sm:$0xff]
    %v97 = vld [vmem:[#allocation6 + $0xd8] sm:$0xff]
    %v98 = vld [vmem:[#allocation6 + $0xe0] sm:$0xff]
    %v99 = vld [vmem:[#allocation6 + $0xe8] sm:$0xff]
    %v100 = vld [vmem:[#allocation6 + $0xf0] sm:$0xff]
    %v101 = vld [vmem:[#allocation6 + $0xf8] sm:$0xff]
    %v102 = vld [vmem:[#allocation6 + $0x100] sm:$0xff]
    %v103 = vld [vmem:[#allocation6 + $0x108] sm:$0xff]
    %v104 = vld [vmem:[#allocation6 + $0x110] sm:$0xff]
    %v105 = vld [vmem:[#allocation6 + $0x118] sm:$0xff]
    %v106 = vld [vmem:[#allocation6 + $0x120] sm:$0xff]
    %v107 = vld [vmem:[#allocation6 + $0x128] sm:$0xff]
    %v108 = vld [vmem:[#allocation6 + $0x130] sm:$0xff]
    %v109 = vld [vmem:[#allocation6 + $0x138] sm:$0xff]
    %v110 = vld [vmem:[#allocation6 + $0x140] sm:$0xff]
    %v111 = vld [vmem:[#allocation6 + $0x148] sm:$0xff]
    %v112 = vld [vmem:[#allocation6 + $0x150] sm:$0xff]
    %v113 = vld [vmem:[#allocation6 + $0x158] sm:$0xff]
    %v114 = vld [vmem:[#allocation6 + $0x160] sm:$0xff]
    %v115 = vld [vmem:[#allocation6 + $0x168] sm:$0xff]
    %v116 = vld [vmem:[#allocation6 + $0x170] sm:$0xff]
    %v117 = vld [vmem:[#allocation6 + $0x178] sm:$0xff]
    %v120 = vunpack.c.l.b16 %v68
    %v121 = vunpack.c.l.b16 %v69
    %v122 = vpack.c.b16 %v121, %v120
    %v172 = vunpack.c.l.b16 %v70
    %v173 = vunpack.c.h.b16 %v70
    %v174 = vunpack.c.l.b16 %v71
    %v175 = vunpack.c.h.b16 %v71
    %v176 = vunpack.c.l.b16 %v72
    %v177 = vunpack.c.h.b16 %v72
    %v178 = vunpack.c.l.b16 %v73
    %v179 = vunpack.c.h.b16 %v73
    %v180 = vunpack.c.l.b16 %v74
    %v181 = vunpack.c.h.b16 %v74
    %v182 = vunpack.c.l.b16 %v75
    %v183 = vunpack.c.h.b16 %v75
    %v184 = vunpack.c.l.b16 %v76
    %v185 = vunpack.c.h.b16 %v76
    %v186 = vunpack.c.l.b16 %v77
    %v187 = vunpack.c.h.b16 %v77
    %v188 = vunpack.c.l.b16 %v78
    %v189 = vunpack.c.h.b16 %v78
    %v190 = vunpack.c.l.b16 %v79
    %v191 = vunpack.c.h.b16 %v79
    %v192 = vunpack.c.l.b16 %v80
    %v193 = vunpack.c.h.b16 %v80
    %v194 = vunpack.c.l.b16 %v81
    %v195 = vunpack.c.h.b16 %v81
    %v196 = vunpack.c.l.b16 %v82
    %v197 = vunpack.c.h.b16 %v82
    %v198 = vunpack.c.l.b16 %v83
    %v199 = vunpack.c.h.b16 %v83
    %v200 = vunpack.c.l.b16 %v84
    %v201 = vunpack.c.h.b16 %v84
    %v202 = vunpack.c.l.b16 %v85
    %v203 = vunpack.c.h.b16 %v85
    %v204 = vunpack.c.l.b16 %v86
    %v205 = vunpack.c.h.b16 %v86
    %v206 = vunpack.c.l.b16 %v87
    %v207 = vunpack.c.h.b16 %v87
    %v208 = vunpack.c.l.b16 %v88
    %v209 = vunpack.c.h.b16 %v88
    %v210 = vunpack.c.l.b16 %v89
    %v211 = vunpack.c.h.b16 %v89
    %v212 = vunpack.c.l.b16 %v90
    %v213 = vunpack.c.h.b16 %v90
    %v214 = vunpack.c.l.b16 %v91
    %v215 = vunpack.c.h.b16 %v91
    %v216 = vunpack.c.l.b16 %v92
    %v217 = vunpack.c.h.b16 %v92
    %v218 = vunpack.c.l.b16 %v93
    %v219 = vunpack.c.h.b16 %v93
    %v220 = vunpack.c.l.b16 %v94
    %v221 = vunpack.c.h.b16 %v94
    %v222 = vunpack.c.l.b16 %v95
    %v223 = vunpack.c.h.b16 %v95
    %v224 = vunpack.c.l.b16 %v96
    %v225 = vunpack.c.h.b16 %v96
    %v226 = vunpack.c.l.b16 %v97
    %v227 = vunpack.c.h.b16 %v97
    %v228 = vunpack.c.l.b16 %v98
    %v229 = vunpack.c.h.b16 %v98
    %v230 = vunpack.c.l.b16 %v99
    %v231 = vunpack.c.h.b16 %v99
    %v232 = vunpack.c.l.b16 %v100
    %v233 = vunpack.c.h.b16 %v100
    %v234 = vunpack.c.l.b16 %v101
    %v235 = vunpack.c.h.b16 %v101
    %v236 = vunpack.c.l.b16 %v102
    %v237 = vunpack.c.h.b16 %v102
    %v238 = vunpack.c.l.b16 %v103
    %v239 = vunpack.c.h.b16 %v103
    %v240 = vunpack.c.l.b16 %v104
    %v241 = vunpack.c.h.b16 %v104
    %v242 = vunpack.c.l.b16 %v105
    %v243 = vunpack.c.h.b16 %v105
    %v244 = vunpack.c.l.b16 %v106
    %v245 = vunpack.c.h.b16 %v106
    %v246 = vunpack.c.l.b16 %v107
    %v247 = vunpack.c.h.b16 %v107
    %v248 = vunpack.c.l.b16 %v108
    %v249 = vunpack.c.h.b16 %v108
    %v250 = vunpack.c.l.b16 %v109
    %v251 = vunpack.c.h.b16 %v109
    %v252 = vunpack.c.l.b16 %v110
    %v253 = vunpack.c.h.b16 %v110
    %v254 = vunpack.c.l.b16 %v111
    %v255 = vunpack.c.h.b16 %v111
    %v256 = vunpack.c.l.b16 %v112
    %v257 = vunpack.c.h.b16 %v112
    %v258 = vunpack.c.l.b16 %v113
    %v259 = vunpack.c.h.b16 %v113
    %v260 = vunpack.c.l.b16 %v114
    %v261 = vunpack.c.h.b16 %v114
    %v262 = vunpack.c.l.b16 %v115
    %v263 = vunpack.c.h.b16 %v115
    %v264 = vunpack.c.l.b16 %v116
    %v265 = vunpack.c.h.b16 %v116
    %v266 = vunpack.c.l.b16 %v117
    %v267 = vunpack.c.h.b16 %v117
    %v268 = vpack.c.b16 %v178, %v172
    %v269 = vpack.c.b16 %v179, %v173
    %v270 = vpack.c.b16 %v180, %v174
    %v271 = vpack.c.b16 %v181, %v175
    %v272 = vpack.c.b16 %v182, %v176
    %v273 = vpack.c.b16 %v183, %v177
    %v274 = vpack.c.b16 %v190, %v184
    %v275 = vpack.c.b16 %v191, %v185
    %v276 = vpack.c.b16 %v192, %v186
    %v277 = vpack.c.b16 %v193, %v187
    %v278 = vpack.c.b16 %v194, %v188
    %v279 = vpack.c.b16 %v195, %v189
    %v280 = vpack.c.b16 %v202, %v196
    %v281 = vpack.c.b16 %v203, %v197
    %v282 = vpack.c.b16 %v204, %v198
    %v283 = vpack.c.b16 %v205, %v199
    %v284 = vpack.c.b16 %v206, %v200
    %v285 = vpack.c.b16 %v207, %v201
    %v286 = vpack.c.b16 %v214, %v208
    %v287 = vpack.c.b16 %v215, %v209
    %v288 = vpack.c.b16 %v216, %v210
    %v289 = vpack.c.b16 %v217, %v211
    %v290 = vpack.c.b16 %v218, %v212
    %v291 = vpack.c.b16 %v219, %v213
    %v292 = vpack.c.b16 %v226, %v220
    %v293 = vpack.c.b16 %v227, %v221
    %v294 = vpack.c.b16 %v228, %v222
    %v295 = vpack.c.b16 %v229, %v223
    %v296 = vpack.c.b16 %v230, %v224
    %v297 = vpack.c.b16 %v231, %v225
    %v298 = vpack.c.b16 %v238, %v232
    %v299 = vpack.c.b16 %v239, %v233
    %v300 = vpack.c.b16 %v240, %v234
    %v301 = vpack.c.b16 %v241, %v235
    %v302 = vpack.c.b16 %v242, %v236
    %v303 = vpack.c.b16 %v243, %v237
    %v304 = vpack.c.b16 %v250, %v244
    %v305 = vpack.c.b16 %v251, %v245
    %v306 = vpack.c.b16 %v252, %v246
    %v307 = vpack.c.b16 %v253, %v247
    %v308 = vpack.c.b16 %v254, %v248
    %v309 = vpack.c.b16 %v255, %v249
    %v310 = vpack.c.b16 %v262, %v256
    %v311 = vpack.c.b16 %v263, %v257
    %v312 = vpack.c.b16 %v264, %v258
    %v313 = vpack.c.b16 %v265, %v259
    %v314 = vpack.c.b16 %v266, %v260
    %v315 = vpack.c.b16 %v267, %v261
    %364 = vmatpush.bf16.msra.mxu0 %v310
    %365 = vmatpush.bf16.msra.mxu0 %v304
    %366 = vmatpush.bf16.msra.mxu0 %v298
    %367 = vmatpush.bf16.msra.mxu0 %v292
    %368 = vmatpush.bf16.msra.mxu0 %v286
    %369 = vmatpush.bf16.msra.mxu0 %v280
    %370 = vmatpush.bf16.msra.mxu0 %v274
    %371 = vmatpush.bf16.msra.mxu0 %v268
    %372 = vmatmul.bf16.gmra.mxu0 %v122
    %v373 = vpop.f32.mrf.mxu0
    %v374 = vadd.f32 0.0, %v373
    %v375 = vpop.f32.mrf.mxu0
    %v376 = vadd.f32 0.0, %v375
    %377 = vdwg.mxu0
    %378 = vmatpush.bf16.msra.mxu0 %v311
    %379 = vmatpush.bf16.msra.mxu0 %v305
    %380 = vmatpush.bf16.msra.mxu0 %v299
    %381 = vmatpush.bf16.msra.mxu0 %v293
    %382 = vmatpush.bf16.msra.mxu0 %v287
    %383 = vmatpush.bf16.msra.mxu0 %v281
    %384 = vmatpush.bf16.msra.mxu0 %v275
    %385 = vmatpush.bf16.msra.mxu0 %v269
    %386 = vmatmul.bf16.gmra.mxu0 %v122
    %v387 = vpop.f32.mrf.mxu0
    %v388 = vadd.f32 0.0, %v387
    %v389 = vpop.f32.mrf.mxu0
    %v390 = vadd.f32 0.0, %v389
    %391 = vdwg.mxu0
    %392 = vmatpush.bf16.msra.mxu0 %v312
    %393 = vmatpush.bf16.msra.mxu0 %v306
    %394 = vmatpush.bf16.msra.mxu0 %v300
    %395 = vmatpush.bf16.msra.mxu0 %v294
    %396 = vmatpush.bf16.msra.mxu0 %v288
    %397 = vmatpush.bf16.msra.mxu0 %v282
    %398 = vmatpush.bf16.msra.mxu0 %v276
    %399 = vmatpush.bf16.msra.mxu0 %v270
    %400 = vmatmul.bf16.gmra.mxu0 %v122
    %v401 = vpop.f32.mrf.mxu0
    %v402 = vadd.f32 0.0, %v401
    %v403 = vpop.f32.mrf.mxu0
    %v404 = vadd.f32 0.0, %v403
    %405 = vdwg.mxu0
    %406 = vmatpush.bf16.msra.mxu0 %v313
    %407 = vmatpush.bf16.msra.mxu0 %v307
    %408 = vmatpush.bf16.msra.mxu0 %v301
    %409 = vmatpush.bf16.msra.mxu0 %v295
    %410 = vmatpush.bf16.msra.mxu0 %v289
    %411 = vmatpush.bf16.msra.mxu0 %v283
    %412 = vmatpush.bf16.msra.mxu0 %v277
    %413 = vmatpush.bf16.msra.mxu0 %v271
    %414 = vmatmul.bf16.gmra.mxu0 %v122
    %v415 = vpop.f32.mrf.mxu0
    %v416 = vadd.f32 0.0, %v415
    %v417 = vpop.f32.mrf.mxu0
    %v418 = vadd.f32 0.0, %v417
    %419 = vdwg.mxu0
    %420 = vmatpush.bf16.msra.mxu0 %v314
    %421 = vmatpush.bf16.msra.mxu0 %v308
    %422 = vmatpush.bf16.msra.mxu0 %v302
    %423 = vmatpush.bf16.msra.mxu0 %v296
    %424 = vmatpush.bf16.msra.mxu0 %v290
    %425 = vmatpush.bf16.msra.mxu0 %v284
    %426 = vmatpush.bf16.msra.mxu0 %v278
    %427 = vmatpush.bf16.msra.mxu0 %v272
    %428 = vmatmul.bf16.gmra.mxu0 %v122
    %v429 = vpop.f32.mrf.mxu0
    %v430 = vadd.f32 0.0, %v429
    %v431 = vpop.f32.mrf.mxu0
    %v432 = vadd.f32 0.0, %v431
    %433 = vdwg.mxu0
    %434 = vmatpush.bf16.msra.mxu0 %v315
    %435 = vmatpush.bf16.msra.mxu0 %v309
    %436 = vmatpush.bf16.msra.mxu0 %v303
    %437 = vmatpush.bf16.msra.mxu0 %v297
    %438 = vmatpush.bf16.msra.mxu0 %v291
    %439 = vmatpush.bf16.msra.mxu0 %v285
    %440 = vmatpush.bf16.msra.mxu0 %v279
    %441 = vmatpush.bf16.msra.mxu0 %v273
    %442 = vmatmul.bf16.gmra.mxu0 %v122
    %v443 = vpop.f32.mrf.mxu0
    %v444 = vadd.f32 0.0, %v443
    %v445 = vpop.f32.mrf.mxu0
    %v446 = vadd.f32 0.0, %v445
    %447 = vdwg.mxu0
    %v448 = vxor.u32 %v416, 2147483648
    %v449 = vxor.u32 %v430, 2147483648
    %v450 = vxor.u32 %v444, 2147483648
    %v451 = vxor.u32 %v418, 2147483648
    %v452 = vxor.u32 %v432, 2147483648
    %v453 = vxor.u32 %v446, 2147483648
    %v454 = vmul.f32 %v448, 1.442695
    %v455 = vpow.pop %v454
    %v456 = vmul.f32 %v449, 1.442695
    %v457 = vpow.pop %v456
    %v458 = vmul.f32 %v450, 1.442695
    %v459 = vpow.pop %v458
    %v460 = vmul.f32 %v451, 1.442695
    %v461 = vpow.pop %v460
    %v462 = vmul.f32 %v452, 1.442695
    %v463 = vpow.pop %v462
    %v464 = vmul.f32 %v453, 1.442695
    %v465 = vpow.pop %v464
    %v466 = vadd.f32 %v455, 1.0
    %v467 = vadd.f32 %v457, 1.0
    %v468 = vadd.f32 %v459, 1.0
    %v469 = vadd.f32 %v461, 1.0
    %v470 = vadd.f32 %v463, 1.0
    %v471 = vadd.f32 %v465, 1.0
    %v472 = vrcp.pop %v466
    %v473 = vmul.f32 %v466, %v472
    %v474 = vsub.f32 1.0, %v473
    %v475 = vmul.f32 %v472, %v474
    %v476 = vadd.f32 %v472, %v475
    %vm477 = vweird.f32 %v466
    %vm478 = vweird.f32 %v472
    %vm479 = vmor %vm477, %vm478
    %v480 = vsel %vm479, %v472, %v476
    %v481 = vand.u32 2147483647, %v466
    %vm482 = vcmp.eq.f32.partialorder %v481, 8.507059e+37
    %v483 = vand.u32 %v466, 2147483648
    %v484 = vor.u32 1.1754944e-38, %v483
    %v485 = vsel %vm482, %v484, %v480
    %v486 = vmul.f32 1.0, %v485
    %v487 = vrcp.pop %v467
    %v488 = vmul.f32 %v467, %v487
    %v489 = vsub.f32 1.0, %v488
    %v490 = vmul.f32 %v487, %v489
    %v491 = vadd.f32 %v487, %v490
    %vm492 = vweird.f32 %v467
    %vm493 = vweird.f32 %v487
    %vm494 = vmor %vm492, %vm493
    %v495 = vsel %vm494, %v487, %v491
    %v496 = vand.u32 2147483647, %v467
    %vm497 = vcmp.eq.f32.partialorder %v496, 8.507059e+37
    %v498 = vand.u32 %v467, 2147483648
    %v499 = vor.u32 1.1754944e-38, %v498
    %v500 = vsel %vm497, %v499, %v495
    %v501 = vmul.f32 1.0, %v500
    %v502 = vrcp.pop %v468
    %v503 = vmul.f32 %v468, %v502
    %v504 = vsub.f32 1.0, %v503
    %v505 = vmul.f32 %v502, %v504
    %v506 = vadd.f32 %v502, %v505
    %vm507 = vweird.f32 %v468
    %vm508 = vweird.f32 %v502
    %vm509 = vmor %vm507, %vm508
    %v510 = vsel %vm509, %v502, %v506
    %v511 = vand.u32 2147483647, %v468
    %vm512 = vcmp.eq.f32.partialorder %v511, 8.507059e+37
    %v513 = vand.u32 %v468, 2147483648
    %v514 = vor.u32 1.1754944e-38, %v513
    %v515 = vsel %vm512, %v514, %v510
    %v516 = vmul.f32 1.0, %v515
    %v517 = vrcp.pop %v469
    %v518 = vmul.f32 %v469, %v517
    %v519 = vsub.f32 1.0, %v518
    %v520 = vmul.f32 %v517, %v519
    %v521 = vadd.f32 %v517, %v520
    %vm522 = vweird.f32 %v469
    %vm523 = vweird.f32 %v517
    %vm524 = vmor %vm522, %vm523
    %v525 = vsel %vm524, %v517, %v521
    %v526 = vand.u32 2147483647, %v469
    %vm527 = vcmp.eq.f32.partialorder %v526, 8.507059e+37
    %v528 = vand.u32 %v469, 2147483648
    %v529 = vor.u32 1.1754944e-38, %v528
    %v530 = vsel %vm527, %v529, %v525
    %v531 = vmul.f32 1.0, %v530
    %v532 = vrcp.pop %v470
    %v533 = vmul.f32 %v470, %v532
    %v534 = vsub.f32 1.0, %v533
    %v535 = vmul.f32 %v532, %v534
    %v536 = vadd.f32 %v532, %v535
    %vm537 = vweird.f32 %v470
    %vm538 = vweird.f32 %v532
    %vm539 = vmor %vm537, %vm538
    %v540 = vsel %vm539, %v532, %v536
    %v541 = vand.u32 2147483647, %v470
    %vm542 = vcmp.eq.f32.partialorder %v541, 8.507059e+37
    %v543 = vand.u32 %v470, 2147483648
    %v544 = vor.u32 1.1754944e-38, %v543
    %v545 = vsel %vm542, %v544, %v540
    %v546 = vmul.f32 1.0, %v545
    %v547 = vrcp.pop %v471
    %v548 = vmul.f32 %v471, %v547
    %v549 = vsub.f32 1.0, %v548
    %v550 = vmul.f32 %v547, %v549
    %v551 = vadd.f32 %v547, %v550
    %vm552 = vweird.f32 %v471
    %vm553 = vweird.f32 %v547
    %vm554 = vmor %vm552, %vm553
    %v555 = vsel %vm554, %v547, %v551
    %v556 = vand.u32 2147483647, %v471
    %vm557 = vcmp.eq.f32.partialorder %v556, 8.507059e+37
    %v558 = vand.u32 %v471, 2147483648
    %v559 = vor.u32 1.1754944e-38, %v558
    %v560 = vsel %vm557, %v559, %v555
    %v561 = vmul.f32 1.0, %v560
    %v562 = vmul.f32 %v416, %v486
    %v563 = vmul.f32 %v430, %v501
    %v564 = vmul.f32 %v444, %v516
    %v565 = vmul.f32 %v418, %v531
    %v566 = vmul.f32 %v432, %v546
    %v567 = vmul.f32 %v446, %v561
    %v568 = vmul.f32 %v374, %v562
    %v569 = vmul.f32 %v388, %v563
    %v570 = vmul.f32 %v402, %v564
    %v571 = vmul.f32 %v376, %v565
    %v572 = vmul.f32 %v390, %v566
    %v573 = vmul.f32 %v404, %v567
    %v574 = vld [vmem:[#allocation2] sm:$0xff]
    %v575 = vld [vmem:[#allocation2 + $0x8] sm:$0xff]
    %v576 = vpack.c.bf16 %v571, %v568
    %v577 = vpack.c.bf16 %v572, %v569
    %v578 = vpack.c.bf16 %v573, %v570
    %v579 = vld [vmem:[#allocation8] sm:$0xf]
    %v580 = vld [vmem:[#allocation8 + $0x4] sm:$0xf]
    %v581 = vld [vmem:[#allocation8 + $0x8] sm:$0xf]
    %v582 = vld [vmem:[#allocation8 + $0xc] sm:$0xf]
    %v583 = vld [vmem:[#allocation8 + $0x10] sm:$0xf]
    %v584 = vld [vmem:[#allocation8 + $0x14] sm:$0xf]
    %v585 = vld [vmem:[#allocation8 + $0x18] sm:$0xf]
    %v586 = vld [vmem:[#allocation8 + $0x1c] sm:$0xf]
    %v587 = vld [vmem:[#allocation8 + $0x20] sm:$0xf]
    %v588 = vld [vmem:[#allocation8 + $0x24] sm:$0xf]
    %v589 = vld [vmem:[#allocation8 + $0x28] sm:$0xf]
    %v590 = vld [vmem:[#allocation8 + $0x2c] sm:$0xf]
    %v591 = vld [vmem:[#allocation8 + $0x30] sm:$0xf]
    %v592 = vld [vmem:[#allocation8 + $0x34] sm:$0xf]
    %v593 = vld [vmem:[#allocation8 + $0x38] sm:$0xf]
    %v594 = vld [vmem:[#allocation8 + $0x3c] sm:$0xf]
    %v595 = vld [vmem:[#allocation8 + $0x40] sm:$0xf]
    %v596 = vld [vmem:[#allocation8 + $0x44] sm:$0xf]
    %v597 = vld [vmem:[#allocation8 + $0x48] sm:$0xf]
    %v598 = vld [vmem:[#allocation8 + $0x4c] sm:$0xf]
    %v599 = vld [vmem:[#allocation8 + $0x50] sm:$0xf]
    %v600 = vld [vmem:[#allocation8 + $0x54] sm:$0xf]
    %v601 = vld [vmem:[#allocation8 + $0x58] sm:$0xf]
    %v602 = vld [vmem:[#allocation8 + $0x5c] sm:$0xf]
    %v603 = vld [vmem:[#allocation8 + $0x60] sm:$0xf]
    %v604 = vld [vmem:[#allocation8 + $0x64] sm:$0xf]
    %v605 = vld [vmem:[#allocation8 + $0x68] sm:$0xf]
    %v606 = vld [vmem:[#allocation8 + $0x6c] sm:$0xf]
    %v607 = vld [vmem:[#allocation8 + $0x70] sm:$0xf]
    %v608 = vld [vmem:[#allocation8 + $0x74] sm:$0xf]
    %v609 = vld [vmem:[#allocation8 + $0x78] sm:$0xf]
    %v610 = vld [vmem:[#allocation8 + $0x7c] sm:$0xf]
    %v611 = vld [vmem:[#allocation8 + $0x80] sm:$0xf]
    %v612 = vld [vmem:[#allocation8 + $0x84] sm:$0xf]
    %v613 = vld [vmem:[#allocation8 + $0x88] sm:$0xf]
    %v614 = vld [vmem:[#allocation8 + $0x8c] sm:$0xf]
    %v615 = vld [vmem:[#allocation8 + $0x90] sm:$0xf]
    %v616 = vld [vmem:[#allocation8 + $0x94] sm:$0xf]
    %v617 = vld [vmem:[#allocation8 + $0x98] sm:$0xf]
    %v618 = vld [vmem:[#allocation8 + $0x9c] sm:$0xf]
    %v619 = vld [vmem:[#allocation8 + $0xa0] sm:$0xf]
    %v620 = vld [vmem:[#allocation8 + $0xa4] sm:$0xf]
    %v621 = vld [vmem:[#allocation8 + $0xa8] sm:$0xf]
    %v622 = vld [vmem:[#allocation8 + $0xac] sm:$0xf]
    %v623 = vld [vmem:[#allocation8 + $0xb0] sm:$0xf]
    %v624 = vld [vmem:[#allocation8 + $0xb4] sm:$0xf]
    %v625 = vld [vmem:[#allocation8 + $0xb8] sm:$0xf]
    %v626 = vld [vmem:[#allocation8 + $0xbc] sm:$0xf]
    %v675 = vunpack.c.l.b16 %v579
    %v676 = vunpack.c.l.b16 %v580
    %v677 = vunpack.c.l.b16 %v581
    %v678 = vunpack.c.l.b16 %v582
    %v679 = vunpack.c.l.b16 %v583
    %v680 = vunpack.c.l.b16 %v584
    %v681 = vunpack.c.l.b16 %v585
    %v682 = vunpack.c.l.b16 %v586
    %v683 = vunpack.c.l.b16 %v587
    %v684 = vunpack.c.l.b16 %v588
    %v685 = vunpack.c.l.b16 %v589
    %v686 = vunpack.c.l.b16 %v590
    %v687 = vunpack.c.l.b16 %v591
    %v688 = vunpack.c.l.b16 %v592
    %v689 = vunpack.c.l.b16 %v593
    %v690 = vunpack.c.l.b16 %v594
    %v691 = vunpack.c.l.b16 %v595
    %v692 = vunpack.c.l.b16 %v596
    %v693 = vunpack.c.l.b16 %v597
    %v694 = vunpack.c.l.b16 %v598
    %v695 = vunpack.c.l.b16 %v599
    %v696 = vunpack.c.l.b16 %v600
    %v697 = vunpack.c.l.b16 %v601
    %v698 = vunpack.c.l.b16 %v602
    %v699 = vunpack.c.l.b16 %v603
    %v700 = vunpack.c.l.b16 %v604
    %v701 = vunpack.c.l.b16 %v605
    %v702 = vunpack.c.l.b16 %v606
    %v703 = vunpack.c.l.b16 %v607
    %v704 = vunpack.c.l.b16 %v608
    %v705 = vunpack.c.l.b16 %v609
    %v706 = vunpack.c.l.b16 %v610
    %v707 = vunpack.c.l.b16 %v611
    %v708 = vunpack.c.l.b16 %v612
    %v709 = vunpack.c.l.b16 %v613
    %v710 = vunpack.c.l.b16 %v614
    %v711 = vunpack.c.l.b16 %v615
    %v712 = vunpack.c.l.b16 %v616
    %v713 = vunpack.c.l.b16 %v617
    %v714 = vunpack.c.l.b16 %v618
    %v715 = vunpack.c.l.b16 %v619
    %v716 = vunpack.c.l.b16 %v620
    %v717 = vunpack.c.l.b16 %v621
    %v718 = vunpack.c.l.b16 %v622
    %v719 = vunpack.c.l.b16 %v623
    %v720 = vunpack.c.l.b16 %v624
    %v721 = vunpack.c.l.b16 %v625
    %v722 = vunpack.c.l.b16 %v626
    %v723 = vpack.c.b16 %v676, %v675
    %v724 = vpack.c.b16 %v678, %v677
    %v725 = vpack.c.b16 %v680, %v679
    %v726 = vpack.c.b16 %v682, %v681
    %v727 = vpack.c.b16 %v684, %v683
    %v728 = vpack.c.b16 %v686, %v685
    %v729 = vpack.c.b16 %v688, %v687
    %v730 = vpack.c.b16 %v690, %v689
    %v731 = vpack.c.b16 %v692, %v691
    %v732 = vpack.c.b16 %v694, %v693
    %v733 = vpack.c.b16 %v696, %v695
    %v734 = vpack.c.b16 %v698, %v697
    %v735 = vpack.c.b16 %v700, %v699
    %v736 = vpack.c.b16 %v702, %v701
    %v737 = vpack.c.b16 %v704, %v703
    %v738 = vpack.c.b16 %v706, %v705
    %v739 = vpack.c.b16 %v708, %v707
    %v740 = vpack.c.b16 %v710, %v709
    %v741 = vpack.c.b16 %v712, %v711
    %v742 = vpack.c.b16 %v714, %v713
    %v743 = vpack.c.b16 %v716, %v715
    %v744 = vpack.c.b16 %v718, %v717
    %v745 = vpack.c.b16 %v720, %v719
    %v746 = vpack.c.b16 %v722, %v721
    %771 = vmatpush.bf16.msra.mxu0 %v730
    %772 = vmatpush.bf16.msra.mxu0 %v729
    %773 = vmatpush.bf16.msra.mxu0 %v728
    %774 = vmatpush.bf16.msra.mxu0 %v727
    %775 = vmatpush.bf16.msra.mxu0 %v726
    %776 = vmatpush.bf16.msra.mxu0 %v725
    %777 = vmatpush.bf16.msra.mxu0 %v724
    %778 = vmatpush.bf16.msra.mxu0 %v723
    %779 = vmatmul.bf16.gmra.mxu0 %v576
    %v780 = vpop.f32.mrf.mxu0
    %v781 = vadd.f32 0.0, %v780
    %v782 = vpop.f32.mrf.mxu0
    %v783 = vadd.f32 0.0, %v782
    %784 = vdwg.mxu0
    %785 = vmatpush.bf16.msra.mxu0 %v738
    %786 = vmatpush.bf16.msra.mxu0 %v737
    %787 = vmatpush.bf16.msra.mxu0 %v736
    %788 = vmatpush.bf16.msra.mxu0 %v735
    %789 = vmatpush.bf16.msra.mxu0 %v734
    %790 = vmatpush.bf16.msra.mxu0 %v733
    %791 = vmatpush.bf16.msra.mxu0 %v732
    %792 = vmatpush.bf16.msra.mxu0 %v731
    %793 = vmatmul.bf16.gmra.mxu0 %v577
    %v794 = vpop.f32.mrf.mxu0
    %v795 = vadd.f32 %v781, %v794
    %v796 = vpop.f32.mrf.mxu0
    %v797 = vadd.f32 %v783, %v796
    %798 = vdwg.mxu0
    %799 = vmatpush.bf16.msra.mxu0 %v746
    %800 = vmatpush.bf16.msra.mxu0 %v745
    %801 = vmatpush.bf16.msra.mxu0 %v744
    %802 = vmatpush.bf16.msra.mxu0 %v743
    %803 = vmatpush.bf16.msra.mxu0 %v742
    %804 = vmatpush.bf16.msra.mxu0 %v741
    %805 = vmatpush.bf16.msra.mxu0 %v740
    %806 = vmatpush.bf16.msra.mxu0 %v739
    %807 = vmatmul.bf16.gmra.mxu0 %v578
    %v808 = vpop.f32.mrf.mxu0
    %v809 = vadd.f32 %v795, %v808
    %v810 = vpop.f32.mrf.mxu0
    %v811 = vadd.f32 %v797, %v810
    %812 = vdwg.mxu0
    %v813 = vadd.f32 %v574, %v809
    %v814 = vadd.f32 %v575, %v811
    %815 = vst [vmem:[#allocation2] sm:$0xff] %v813
    %816 = vst [vmem:[#allocation2 + $0x8] sm:$0xff] %v814
    // Predicated region
    $region30: #{tpu_custom_call.1} parent=1 // pred_check
      %p817 = pneg %p62
    $region31: #{tpu_custom_call.1} parent=1 // pred_check_branch
      %819 = sbr.rel (%p817) target = $region33
    $region32: #{tpu_custom_call.1} parent=1 // pred_region
      %v820 = vld [vmem:[#allocation2] sm:$0xff]
      %v821 = vld [vmem:[#allocation2 + $0x8] sm:$0xff]
      %822 = vst [vmem:[#allocation9] sm:$0xff] %v820
      %823 = vst [vmem:[#allocation9 + $0x8] sm:$0xff] %v821
    $region33: #{tpu_custom_call.1} parent=1 // pred_fallthru
      _
    // Predicated region
    $region34: #{tpu_custom_call.1} parent=1 // pred_check
      _
    $region35: #{tpu_custom_call.1} parent=1 // pred_check_branch
      %825 = sbr.rel (0) target = $region37
    $region36: #{tpu_custom_call.1} parent=1 // pred_region
      %827 = vsyncadd [#allocation5], 0
      %s828 = sshll.u32 [#allocation9], 4
      %s829 = int_to_ptr.vmem [resolvable:$true] %s828
      %s830 = sshll.u32 %s3, 4
      %s831 = int_to_ptr.hbm [resolvable:$true] %s830
      %836 = dma.vmem_to_hbm [thread:$0]  %s829, 256, %s831, [#allocation5], 128, 128, 8
    $region37: #{tpu_custom_call.1} parent=1 // pred_fallthru
      _
    // Predicated region
    $region38: #{tpu_custom_call.1} parent=1 // pred_check
      _
    $region39: #{tpu_custom_call.1} parent=1 // pred_check_branch
      %838 = sbr.rel (0) target = $region41
    $region40: #{tpu_custom_call.1} parent=1 // pred_region
      %840 = dma.done [#allocation5], 256
    $region41: #{tpu_custom_call.1} parent=1 // pred_fallthru
      _
    %841 = vsyncpa [#allocation4], 1
    %842 = vsyncpa [#allocation7], 1
    %843 = vsyncpa [#allocation5], 1

</llo_original>
